<compile_context>
chip_gen: v7x
topology: tpu7x:2x2x1
jax: 0.10.0
libtpu: 0.0.40
codegen_flags: <defaults>
</compile_context>

<pallas_src>
import jax
import jax.numpy as jnp
from jax.experimental import pallas as pl
from jax.experimental.pallas import tpu as pltpu


def _copy_kernel(x_ref, o_ref):
    # Pure lane-dense copy of one (TILE_R, H*W) slab.  No in-kernel reshape:
    # that would force a 16-lane output (masked partial stores) and possible
    # VMEM relayout; the reshape is free outside the kernel.
    o_ref[...] = x_ref[...]


def view(x, h=None, w=None):
    """Pallas equivalent of View.forward: (B, C, H*W) -> (B, C, H, W).

    Matches the PyTorch module: H = W = round(sqrt(last_dim)) unless h/w are
    given explicitly (the module assumes square spatial dims).
    Row-major (contiguous last axis) semantics, identical to torch.reshape.
    """
    b, c, hw = x.shape
    if h is None:
        h = int(round(hw ** 0.5))
    if w is None:
        w = h
    assert h * w == hw, "last dim must equal H*W"

    rows = b * c
    # Free metadata reshape: flatten leading dims so the kernel sees a 2-D
    # slab with a lane-dense last dim (H*W, a multiple of 128 for typical
    # feature maps; 256 in the example).
    x2 = x.reshape(rows, hw)

    dtype_bytes = jnp.dtype(x.dtype).itemsize
    # Sublane granularity: 8 for 32-bit, 16 for bf16/fp16, 32 for int8/fp8.
    sublane = max(8, 32 // dtype_bytes)

    # Pick a large row tile (amortizes the ~0.35us per-grid-step overhead),
    # capped so in+out double-buffered blocks stay well under VMEM even on
    # v7x (64 MiB physical / 32 MiB scoped default): cap each block at 4 MiB.
    target_block_bytes = 4 * 1024 * 1024
    row_bytes = hw * dtype_bytes
    if rows % sublane == 0:
        tile_r = max(sublane, (target_block_bytes // row_bytes) // sublane * sublane)
        tile_r = min(tile_r, rows)
    else:
        # Small / odd row counts: take the full extent (allowed by the
        # (8,128) rule when the block equals the array dim).
        tile_r = rows

    grid = (pl.cdiv(rows, tile_r),)

    y2 = pl.pallas_call(
        _copy_kernel,
        out_shape=jax.ShapeDtypeStruct((rows, hw), x.dtype),
        grid_spec=pl.GridSpec(
            grid=grid,
            in_specs=[pl.BlockSpec((tile_r, hw), lambda i: (i, 0))],
            out_specs=pl.BlockSpec((tile_r, hw), lambda i: (i, 0)),
        ),
        compiler_params=pltpu.CompilerParams(
            dimension_semantics=("parallel",),
            # Explicit cap (4 blocks x 4 MiB x double-buffer headroom) so the
            # same tiling compiles on v7x's smaller VMEM.
            vmem_limit_bytes=64 * 1024 * 1024,
        ),
    )(x2)

    # Free metadata reshape to the NCHW output the module specifies.
    return y2.reshape(b, c, h, w)


if __name__ == "__main__":
    # Module has no parameters (__init__ is empty) — nothing to initialize.
    key = jax.random.PRNGKey(0)
    B, C, H, W = 2, 4, 16, 16
    x = jax.random.normal(key, (B, C, H * W), dtype=jnp.float32)

    y = view(x)
    jax.block_until_ready(y)

    # Reference: plain row-major reshape (same semantics as torch.reshape).
    ref = x.reshape(B, C, H, W)
    assert y.shape == (B, C, H, W), y.shape
    assert y.dtype == x.dtype
    assert bool(jnp.array_equal(y, ref))

    print("KERNEL_OK")
</pallas_src>

<mosaic_0001>
module attributes {stable_mosaic.version = 11 : i64} {
  func.func @_copy_kernel(%arg0: i32, %arg1: memref<8x256xf32, #tpu.memory_space<vmem>>, %arg2: memref<8x256xf32, #tpu.memory_space<vmem>>) attributes {dimension_semantics = [#tpu.dimension_semantics<parallel>], iteration_bounds = array<i64: 1>, scalar_prefetch = 0 : i64, scratch_operands = 0 : i64, tpu.core_type = #tpu.core_type<tc>, window_params = [{transform_indices = @transform_0, window_bounds = array<i64: 8, 256>}, {transform_indices = @transform_1, window_bounds = array<i64: 8, 256>}]} {
    %c0 = arith.constant 0 : index
    %c0_0 = arith.constant 0 : index
    %0 = vector.load %arg1[%c0, %c0_0] : memref<8x256xf32, #tpu.memory_space<vmem>>, vector<8x256xf32>
    %c0_1 = arith.constant 0 : index
    %c0_2 = arith.constant 0 : index
    %1 = vector.load %arg2[%c0_1, %c0_2] : memref<8x256xf32, #tpu.memory_space<vmem>>, vector<8x256xf32>
    tpu.vector_store %arg2[%c0_1, %c0_2], %0 {strides = array<i32>} : memref<8x256xf32, #tpu.memory_space<vmem>>, vector<8x256xf32>,
    return
  }
  func.func @transform_0(%arg0: i32) -> (i32, i32) {
    %c0_i32 = arith.constant 0 : i32
    %c0_i32_0 = arith.constant 0 : i32
    return %arg0, %c0_i32 : i32, i32
  }
  func.func @transform_1(%arg0: i32) -> (i32, i32) {
    %c0_i32 = arith.constant 0 : i32
    %c0_i32_0 = arith.constant 0 : i32
    return %arg0, %c0_i32 : i32, i32
  }
}

</mosaic_0001>

<llo_original>
// kernel: tpu_custom_call.1
$region0: #{tpu_custom_call.1}
  #allocation0 [shape = 'u32[]', space=smem, size = 0x4, offset = 0x4, fixed_abs, tag = 'smem constant byte address 0x4 - core index']
  #allocation1 [shape = 'u32[144,128]{1,0:T(1,128)}', space=vmem, size = 0x12000, scoped, tag = 'internal scratch']
  %s0 = inlined_call_operand.hbm [shape: f32[8,256], index: 0, kind: input, shape index: {}]
  %s1 = inlined_call_operand.hbm [shape: f32[8,256], index: 1, kind: output, shape index: {}]
  %s2 = sld [smem:[#allocation0]]
  $region18: #{tpu_custom_call.1} parent=0
    _
  %s4 = ssub.s32 1, %s2
  %s5 = scalar_select 0, %s4, %s2
  $region1: #{tpu_custom_call.1} parent=0
    #allocation2 [shape = 'u8[8192]{0}', space=vmem, size = 0x2000, scoped, tag = 'input window, operand 0, single buffered']
    #allocation3 [shape = 's32[1]{0}', space=sflag, size = 0x4, scoped, tag = 'scoped memory for tpu_custom_call.1']
    #allocation4 [shape = 's32[1]{0}', space=sflag, size = 0x4, scoped, tag = 'scoped memory for tpu_custom_call.1']
    #allocation5 [shape = 'u8[8192]{0}', space=vmem, size = 0x2000, scoped, tag = 'output window, operand 0, single buffered']
    %6 = vsyncpa [#allocation3], 0
    %7 = vsyncpa [#allocation4], 0
    // Predicated region
    $region2: #{tpu_custom_call.1} parent=1 // pred_check
      _
    $region3: #{tpu_custom_call.1} parent=1 // pred_check_branch
      %9 = sbr.rel (0) target = $region5
    $region4: #{tpu_custom_call.1} parent=1 // pred_region
      %s11 = ssub.s32 256, 256
      %12 = vsyncadd [#allocation3], %s11
      %s14 = sshll.u32 [#allocation2], 4
      %s15 = int_to_ptr.vmem [resolvable:$true] %s14
      %17 = dma.hbm_to_vmem [thread:$0]  %s0, 256, %s15, [#allocation3]
    $region5: #{tpu_custom_call.1} parent=1 // pred_fallthru
      _
    // Predicated region
    $region6: #{tpu_custom_call.1} parent=1 // pred_check
      _
    $region7: #{tpu_custom_call.1} parent=1 // pred_check_branch
      %19 = sbr.rel (0) target = $region9
    $region8: #{tpu_custom_call.1} parent=1 // pred_region
      %20 = dma.done [#allocation3], 256
    $region9: #{tpu_custom_call.1} parent=1 // pred_fallthru
      _
    %v21 = vld [vmem:[#allocation2] sm:$0xff]
    %v22 = vld [vmem:[#allocation2 + $0x8] sm:$0xff]
    %23 = vst [vmem:[#allocation5] sm:$0xff] %v21
    %24 = vst [vmem:[#allocation5 + $0x8] sm:$0xff] %v22
    // Predicated region
    $region10: #{tpu_custom_call.1} parent=1 // pred_check
      _
    $region11: #{tpu_custom_call.1} parent=1 // pred_check_branch
      %26 = sbr.rel (0) target = $region13
    $region12: #{tpu_custom_call.1} parent=1 // pred_region
      %s28 = ssub.s32 256, 256
      %29 = vsyncadd [#allocation4], %s28
      %s31 = sshll.u32 [#allocation5], 4
      %s32 = int_to_ptr.vmem [resolvable:$true] %s31
      %34 = dma.vmem_to_hbm [thread:$0]  %s32, 256, %s1, [#allocation4]
    $region13: #{tpu_custom_call.1} parent=1 // pred_fallthru
      _
    // Predicated region
    $region14: #{tpu_custom_call.1} parent=1 // pred_check
      _
    $region15: #{tpu_custom_call.1} parent=1 // pred_check_branch
      %36 = sbr.rel (0) target = $region17
    $region16: #{tpu_custom_call.1} parent=1 // pred_region
      %37 = dma.done [#allocation4], 256
    $region17: #{tpu_custom_call.1} parent=1 // pred_fallthru
      _
    %38 = vsyncpa [#allocation3], 1
    %39 = vsyncpa [#allocation4], 1

</llo_original>
